<compile_context>
chip_gen: v5e
topology: v5e:2x2
jax: 0.10.0
libtpu: 0.0.40
codegen_flags: <defaults>
</compile_context>

<pallas_src>
import jax
import jax.numpy as jnp
from jax.experimental import pallas as pl
from jax.experimental.pallas import tpu as pltpu

XC_COUNT = 5   # one-hot width; matches Linear(5, 16) input of layer_xc
BN_EPS = 1e-5


def _round_up(n, m):
    return (n + m - 1) // m * m


# ---------------------------------------------------------------------------
# Kernel
# ---------------------------------------------------------------------------
def dense_ohe_kernel(
    x_ref, xc_ref,
    wx_ref, tx_ref,            # layer_x : (30,64) bf16 (BN scale folded), (1,64) f32 shift
    w1x_ref, t1xc_ref,         # layer_1 : (64,64) bf16 (x half of W1), (6,64) f32 per-class shifts
    wh0_ref, th0_ref,          # hidden 0
    wh1_ref, th1_ref,          # hidden 1
    wo_ref, bo_ref,            # output Linear(64,1): (64,1) bf16, (1,1) f32
    o_ref,
):
    x = x_ref[...]                                   # (TB, 30) f32
    xc = xc_ref[...]                                 # (TB, 1)  f32 class ids (0..4 exact)

    def dense_bn_relu(h, w_ref, t_ref):
        # bf16 MXU operands, f32 accumulate; BN scale already folded into w.
        z = jnp.dot(h.astype(jnp.bfloat16), w_ref[...],
                    preferred_element_type=jnp.float32)
        return jnp.maximum(z + t_ref[...], 0.0)      # shift (bias+BN) + ReLU; Dropout = id

    hx = dense_bn_relu(x, wx_ref, tx_ref)            # (TB, 64)

    # layer_1 shift per row: t1 + (xc branch through layer_xc and W1[64:]).
    # Precomputed per class in t1xc rows 0..4; row 5 = t1 alone (fallback for
    # out-of-range xc, matching zero one-hot semantics).  Pure VPU selects.
    t1xc = t1xc_ref[...]                             # (6, 64) f32
    shift = t1xc[XC_COUNT:XC_COUNT + 1, :]           # (1, 64) fallback row
    for k in range(XC_COUNT):
        shift = jnp.where(xc == jnp.float32(k), t1xc[k:k + 1, :], shift)

    z1 = jnp.dot(hx.astype(jnp.bfloat16), w1x_ref[...],
                 preferred_element_type=jnp.float32)
    h = jnp.maximum(z1 + shift, 0.0)                 # (TB, 64)

    h = dense_bn_relu(h, wh0_ref, th0_ref)           # (TB, 64)
    h = dense_bn_relu(h, wh1_ref, th1_ref)           # (TB, 64)

    # Output Linear(64,1). (TB,1) store is tiny; masked partial store acceptable.
    o_ref[...] = (jnp.dot(h.astype(jnp.bfloat16), wo_ref[...],
                          preferred_element_type=jnp.float32)
                  + bo_ref[...])                     # (TB, 1)


# ---------------------------------------------------------------------------
# Parameters (synthetic, deterministic) + eval-mode folding
# ---------------------------------------------------------------------------
def _init_linear_bn(key, d_in, d_out):
    k = jax.random.split(key, 6)
    return dict(
        w=jax.random.normal(k[0], (d_in, d_out), jnp.float32) / jnp.sqrt(d_in),
        b=0.01 * jax.random.normal(k[1], (d_out,), jnp.float32),
        gamma=1.0 + 0.1 * jax.random.normal(k[2], (d_out,), jnp.float32),
        beta=0.01 * jax.random.normal(k[3], (d_out,), jnp.float32),
        mean=0.05 * jax.random.normal(k[4], (d_out,), jnp.float32),
        var=1.0 + 0.1 * jnp.abs(jax.random.normal(k[5], (d_out,), jnp.float32)),
    )


def make_raw_params(key, hidden_units=64):
    ks = jax.random.split(key, 7)
    px = _init_linear_bn(ks[0], 30, 64)                    # layer_x
    pxc = _init_linear_bn(ks[1], XC_COUNT, 16)             # layer_xc
    p1 = _init_linear_bn(ks[2], 64 + 16, hidden_units)     # layer_1
    ph0 = _init_linear_bn(ks[3], hidden_units, hidden_units)
    ph1 = _init_linear_bn(ks[4], hidden_units, hidden_units)
    wo = jax.random.normal(ks[5], (hidden_units, 1), jnp.float32) / jnp.sqrt(hidden_units)
    bo = 0.01 * jax.random.normal(ks[6], (1,), jnp.float32)
    return (px, pxc, p1, ph0, ph1, wo, bo)


def fold_params(raw_params, mxu_dtype=jnp.bfloat16):
    """Fold eval-mode BN + Linear bias into (W', shift); fold the whole XC
    branch + layer_1 shift into a (XC_COUNT+1, hidden) per-class shift table.
    Weights are cast to bf16 (MXU operands); shifts stay f32."""
    px, pxc, p1, ph0, ph1, wo, bo = raw_params

    def fold(p):
        scale = p["gamma"] / jnp.sqrt(p["var"] + BN_EPS)
        shift = ((p["b"] - p["mean"]) * scale + p["beta"]).reshape(1, -1)
        return p["w"] * scale[None, :], shift

    wx, tx = fold(px)                    # (30, 64)
    wxc, txc = fold(pxc)                 # (5, 16)
    w1, t1 = fold(p1)                    # (80, hidden)
    w1x, w1c = w1[:64, :], w1[64:, :]
    # relu(one_hot(k) @ wxc + txc) @ w1c  ==  xc_table[k]  (pure function of 5 classes)
    xc_table = jnp.maximum(wxc + txc, 0.0) @ w1c            # (5, hidden)
    # rows 0..4: t1 + per-class contribution; row 5: t1 (out-of-range fallback)
    t1xc = jnp.concatenate([t1 + xc_table, t1], axis=0).astype(jnp.float32)  # (6, hidden)
    wh0, th0 = fold(ph0)
    wh1, th1 = fold(ph1)

    c = lambda a: a.astype(mxu_dtype)
    return (c(wx), tx,
            c(w1x), t1xc,
            c(wh0), th0,
            c(wh1), th1,
            c(wo), bo.reshape(1, 1).astype(jnp.float32))


# ---------------------------------------------------------------------------
# Wrapper
# ---------------------------------------------------------------------------
def dense_ohe_forward(x, xc, kernel_params, *, block_rows=2048):
    """x: (B, 30) f32; xc: (B, 1) class ids in [0, XC_COUNT) stored as any real dtype."""
    B = x.shape[0]
    x = x.astype(jnp.float32)
    xc_f32 = xc.reshape(B, 1).astype(jnp.float32)   # ids 0..4 exact in f32

    # Tile selection:
    #  * multiple of 8 sublanes (also fixes user-supplied non-multiple block_rows)
    #  * at most ceil(B/2) rows so there are >=2 tiles whenever B > 8
    #    (keeps both v7x TensorCores busy under dimension_semantics="parallel")
    #  * no wrapper-side padding: ragged last block rows are garbage-in and
    #    their output stores are masked by the DMA.
    block_rows = _round_up(max(int(block_rows), 8), 8)
    tb = max(8, min(block_rows, _round_up(pl.cdiv(B, 2), 8)))
    num_tiles = pl.cdiv(B, tb)

    row_spec = lambda d: pl.BlockSpec((tb, d), lambda i: (i, 0))
    const_spec = lambda shape: pl.BlockSpec(shape, lambda i: (0, 0))

    in_specs = [row_spec(x.shape[1]), row_spec(1)]
    in_specs += [const_spec(p.shape) for p in kernel_params]

    out = pl.pallas_call(
        dense_ohe_kernel,
        out_shape=jax.ShapeDtypeStruct((B, 1), jnp.float32),
        grid=(num_tiles,),
        in_specs=in_specs,
        out_specs=row_spec(1),
        compiler_params=pltpu.CompilerParams(
            dimension_semantics=("parallel",),       # shard batch tiles across TCs (v7x)
            vmem_limit_bytes=32 * 1024 * 1024,       # ~10-12 MiB needed at tb=2048; safe on v5e/v6e/v7x
        ),
    )(x, xc_f32, *kernel_params)
    return out


# ---------------------------------------------------------------------------
# Pure-JAX reference of the original (eval-mode) module math, full f32.
# ---------------------------------------------------------------------------
def dense_ohe_reference(x, xc, raw_params):
    px, pxc, p1, ph0, ph1, wo, bo = raw_params

    def layer(h, p):
        z = h @ p["w"] + p["b"]
        z = (z - p["mean"]) / jnp.sqrt(p["var"] + BN_EPS) * p["gamma"] + p["beta"]
        return jnp.maximum(z, 0.0)

    B = x.shape[0]
    ohe = jax.nn.one_hot(xc.reshape(B).astype(jnp.int32), XC_COUNT, dtype=jnp.float32)
    hx = layer(x, px)
    hc = layer(ohe, pxc)
    h = layer(jnp.concatenate([hx, hc], axis=1), p1)
    h = layer(h, ph0)
    h = layer(h, ph1)
    return h @ wo + bo.reshape(1, 1)


if __name__ == "__main__":
    key = jax.random.PRNGKey(0)
    k_x, k_xc, k_p = jax.random.split(key, 3)

    raw = make_raw_params(k_p, hidden_units=64)
    kparams = fold_params(raw)

    # Small test (single tile).
    B = 8
    x = jax.random.normal(k_x, (B, 30), jnp.float32)
    xc = jax.random.randint(k_xc, (B, 1), 0, XC_COUNT).astype(jnp.float32)
    out = jax.block_until_ready(dense_ohe_forward(x, xc, kparams))
    ref = dense_ohe_reference(x, xc, raw)
    assert out.shape == (B, 1) and out.dtype == jnp.float32
    assert jnp.allclose(out, ref, rtol=2e-2, atol=2e-2), float(jnp.max(jnp.abs(out - ref)))

    # Exercise the multi-tile grid + ragged-last-block path (300 rows, tb=128 -> 3 tiles,
    # last tile covers only 44 valid rows; no wrapper-side padding copy is made).
    B2 = 300
    x2 = jax.random.normal(jax.random.PRNGKey(1), (B2, 30), jnp.float32)
    xc2 = jax.random.randint(jax.random.PRNGKey(2), (B2, 1), 0, XC_COUNT).astype(jnp.float32)
    out2 = jax.block_until_ready(dense_ohe_forward(x2, xc2, kparams, block_rows=128))
    ref2 = dense_ohe_reference(x2, xc2, raw)
    assert out2.shape == (B2, 1)
    assert jnp.allclose(out2, ref2, rtol=2e-2, atol=2e-2), float(jnp.max(jnp.abs(out2 - ref2)))

    # Default (2048-row) tile path with an auto-split so >=2 tiles exist.
    out3 = jax.block_until_ready(dense_ohe_forward(x2, xc2, kparams))
    assert jnp.allclose(out3, ref2, rtol=2e-2, atol=2e-2), float(jnp.max(jnp.abs(out3 - ref2)))

    print("KERNEL_OK")
</pallas_src>

<mosaic_0001>
module attributes {stable_mosaic.version = 11 : i64} {
  func.func @dense_ohe_kernel(%arg0: i32, %arg1: memref<8x30xf32, #tpu.memory_space<vmem>>, %arg2: memref<8x1xf32, #tpu.memory_space<vmem>>, %arg3: memref<30x64xbf16, #tpu.memory_space<vmem>>, %arg4: memref<1x64xf32, #tpu.memory_space<vmem>>, %arg5: memref<64x64xbf16, #tpu.memory_space<vmem>>, %arg6: memref<6x64xf32, #tpu.memory_space<vmem>>, %arg7: memref<64x64xbf16, #tpu.memory_space<vmem>>, %arg8: memref<1x64xf32, #tpu.memory_space<vmem>>, %arg9: memref<64x64xbf16, #tpu.memory_space<vmem>>, %arg10: memref<1x64xf32, #tpu.memory_space<vmem>>, %arg11: memref<64x1xbf16, #tpu.memory_space<vmem>>, %arg12: memref<1x1xf32, #tpu.memory_space<vmem>>, %arg13: memref<8x1xf32, #tpu.memory_space<vmem>>) attributes {dimension_semantics = [#tpu.dimension_semantics<parallel>], iteration_bounds = array<i64: 1>, scalar_prefetch = 0 : i64, scratch_operands = 0 : i64, tpu.core_type = #tpu.core_type<tc>, window_params = [{transform_indices = @transform_0, window_bounds = array<i64: 8, 30>}, {transform_indices = @transform_1, window_bounds = array<i64: 8, 1>}, {pipeline_mode = #tpu.pipeline_mode<synchronous>, transform_indices = @transform_2, window_bounds = array<i64: 30, 64>}, {pipeline_mode = #tpu.pipeline_mode<synchronous>, transform_indices = @transform_3, window_bounds = array<i64: 1, 64>}, {pipeline_mode = #tpu.pipeline_mode<synchronous>, transform_indices = @transform_4, window_bounds = array<i64: 64, 64>}, {pipeline_mode = #tpu.pipeline_mode<synchronous>, transform_indices = @transform_5, window_bounds = array<i64: 6, 64>}, {pipeline_mode = #tpu.pipeline_mode<synchronous>, transform_indices = @transform_6, window_bounds = array<i64: 64, 64>}, {pipeline_mode = #tpu.pipeline_mode<synchronous>, transform_indices = @transform_7, window_bounds = array<i64: 1, 64>}, {pipeline_mode = #tpu.pipeline_mode<synchronous>, transform_indices = @transform_8, window_bounds = array<i64: 64, 64>}, {pipeline_mode = #tpu.pipeline_mode<synchronous>, transform_indices = @transform_9, window_bounds = array<i64: 1, 64>}, {pipeline_mode = #tpu.pipeline_mode<synchronous>, transform_indices = @transform_10, window_bounds = array<i64: 64, 1>}, {pipeline_mode = #tpu.pipeline_mode<synchronous>, transform_indices = @transform_11, window_bounds = array<i64: 1, 1>}, {transform_indices = @transform_12, window_bounds = array<i64: 8, 1>}]} {
    %c0 = arith.constant 0 : index
    %c0_0 = arith.constant 0 : index
    %0 = vector.load %arg1[%c0, %c0_0] : memref<8x30xf32, #tpu.memory_space<vmem>>, vector<8x30xf32>
    %c0_1 = arith.constant 0 : index
    %c0_2 = arith.constant 0 : index
    %1 = vector.load %arg2[%c0_1, %c0_2] : memref<8x1xf32, #tpu.memory_space<vmem>>, vector<8x1xf32>
    %2 = arith.truncf %0 : vector<8x30xf32> to vector<8x30xbf16>
    %c0_3 = arith.constant 0 : index
    %c0_4 = arith.constant 0 : index
    %3 = vector.load %arg3[%c0_3, %c0_4] : memref<30x64xbf16, #tpu.memory_space<vmem>>, vector<30x64xbf16>
    %cst = arith.constant dense<0.000000e+00> : vector<8x64xf32>
    %4 = tpu.matmul %2, %3, %cst {dimension_numbers = #tpu.dot_dimension_numbers<[1], [0], [0], [1], [0, 0, 1, 1], [], []>} : vector<8x30xbf16>, vector<30x64xbf16>, vector<8x64xf32> -> vector<8x64xf32>
    %c0_5 = arith.constant 0 : index
    %c0_6 = arith.constant 0 : index
    %5 = vector.load %arg4[%c0_5, %c0_6] : memref<1x64xf32, #tpu.memory_space<vmem>>, vector<1x64xf32>
    %6 = vector.broadcast %5 : vector<1x64xf32> to vector<8x64xf32>
    %7 = arith.addf %4, %6 : vector<8x64xf32>
    %cst_7 = arith.constant 0.000000e+00 : f32
    %8 = vector.broadcast %cst_7 : f32 to vector<8x64xf32>
    %9 = arith.maximumf %7, %8 : vector<8x64xf32>
    %c0_8 = arith.constant 0 : index
    %c0_9 = arith.constant 0 : index
    %10 = vector.load %arg6[%c0_8, %c0_9] : memref<6x64xf32, #tpu.memory_space<vmem>>, vector<6x64xf32>
    %11 = vector.extract_strided_slice %10 {offsets = [5, 0], sizes = [1, 64], strides = [1, 1]} : vector<6x64xf32> to vector<1x64xf32>
    %cst_10 = arith.constant 0.000000e+00 : f32
    %12 = vector.broadcast %cst_10 : f32 to vector<8x1xf32>
    %13 = arith.cmpf oeq, %1, %12 : vector<8x1xf32>
    %14 = vector.extract_strided_slice %10 {offsets = [0, 0], sizes = [1, 64], strides = [1, 1]} : vector<6x64xf32> to vector<1x64xf32>
    %15 = vector.shape_cast %13 : vector<8x1xi1> to vector<8x1xi1>
    %16 = vector.broadcast %15 : vector<8x1xi1> to vector<8x64xi1>
    %17 = vector.shape_cast %14 : vector<1x64xf32> to vector<1x64xf32>
    %18 = vector.broadcast %17 : vector<1x64xf32> to vector<8x64xf32>
    %19 = vector.shape_cast %11 : vector<1x64xf32> to vector<1x64xf32>
    %20 = vector.broadcast %19 : vector<1x64xf32> to vector<8x64xf32>
    %21 = arith.select %16, %18, %20 : vector<8x64xi1>, vector<8x64xf32>
    %cst_11 = arith.constant 1.000000e+00 : f32
    %22 = vector.broadcast %cst_11 : f32 to vector<8x1xf32>
    %23 = arith.cmpf oeq, %1, %22 : vector<8x1xf32>
    %24 = vector.extract_strided_slice %10 {offsets = [1, 0], sizes = [1, 64], strides = [1, 1]} : vector<6x64xf32> to vector<1x64xf32>
    %25 = vector.shape_cast %23 : vector<8x1xi1> to vector<8x1xi1>
    %26 = vector.broadcast %25 : vector<8x1xi1> to vector<8x64xi1>
    %27 = vector.shape_cast %24 : vector<1x64xf32> to vector<1x64xf32>
    %28 = vector.broadcast %27 : vector<1x64xf32> to vector<8x64xf32>
    %29 = arith.select %26, %28, %21 : vector<8x64xi1>, vector<8x64xf32>
    %cst_12 = arith.constant 2.000000e+00 : f32
    %30 = vector.broadcast %cst_12 : f32 to vector<8x1xf32>
    %31 = arith.cmpf oeq, %1, %30 : vector<8x1xf32>
    %32 = vector.extract_strided_slice %10 {offsets = [2, 0], sizes = [1, 64], strides = [1, 1]} : vector<6x64xf32> to vector<1x64xf32>
    %33 = vector.shape_cast %31 : vector<8x1xi1> to vector<8x1xi1>
    %34 = vector.broadcast %33 : vector<8x1xi1> to vector<8x64xi1>
    %35 = vector.shape_cast %32 : vector<1x64xf32> to vector<1x64xf32>
    %36 = vector.broadcast %35 : vector<1x64xf32> to vector<8x64xf32>
    %37 = arith.select %34, %36, %29 : vector<8x64xi1>, vector<8x64xf32>
    %cst_13 = arith.constant 3.000000e+00 : f32
    %38 = vector.broadcast %cst_13 : f32 to vector<8x1xf32>
    %39 = arith.cmpf oeq, %1, %38 : vector<8x1xf32>
    %40 = vector.extract_strided_slice %10 {offsets = [3, 0], sizes = [1, 64], strides = [1, 1]} : vector<6x64xf32> to vector<1x64xf32>
    %41 = vector.shape_cast %39 : vector<8x1xi1> to vector<8x1xi1>
    %42 = vector.broadcast %41 : vector<8x1xi1> to vector<8x64xi1>
    %43 = vector.shape_cast %40 : vector<1x64xf32> to vector<1x64xf32>
    %44 = vector.broadcast %43 : vector<1x64xf32> to vector<8x64xf32>
    %45 = arith.select %42, %44, %37 : vector<8x64xi1>, vector<8x64xf32>
    %cst_14 = arith.constant 4.000000e+00 : f32
    %46 = vector.broadcast %cst_14 : f32 to vector<8x1xf32>
    %47 = arith.cmpf oeq, %1, %46 : vector<8x1xf32>
    %48 = vector.extract_strided_slice %10 {offsets = [4, 0], sizes = [1, 64], strides = [1, 1]} : vector<6x64xf32> to vector<1x64xf32>
    %49 = vector.shape_cast %47 : vector<8x1xi1> to vector<8x1xi1>
    %50 = vector.broadcast %49 : vector<8x1xi1> to vector<8x64xi1>
    %51 = vector.shape_cast %48 : vector<1x64xf32> to vector<1x64xf32>
    %52 = vector.broadcast %51 : vector<1x64xf32> to vector<8x64xf32>
    %53 = arith.select %50, %52, %45 : vector<8x64xi1>, vector<8x64xf32>
    %54 = arith.truncf %9 : vector<8x64xf32> to vector<8x64xbf16>
    %c0_15 = arith.constant 0 : index
    %c0_16 = arith.constant 0 : index
    %55 = vector.load %arg5[%c0_15, %c0_16] : memref<64x64xbf16, #tpu.memory_space<vmem>>, vector<64x64xbf16>
    %cst_17 = arith.constant dense<0.000000e+00> : vector<8x64xf32>
    %56 = tpu.matmul %54, %55, %cst_17 {dimension_numbers = #tpu.dot_dimension_numbers<[1], [0], [0], [1], [0, 0, 1, 1], [], []>} : vector<8x64xbf16>, vector<64x64xbf16>, vector<8x64xf32> -> vector<8x64xf32>
    %57 = arith.addf %56, %53 : vector<8x64xf32>
    %cst_18 = arith.constant 0.000000e+00 : f32
    %58 = vector.broadcast %cst_18 : f32 to vector<8x64xf32>
    %59 = arith.maximumf %57, %58 : vector<8x64xf32>
    %60 = arith.truncf %59 : vector<8x64xf32> to vector<8x64xbf16>
    %c0_19 = arith.constant 0 : index
    %c0_20 = arith.constant 0 : index
    %61 = vector.load %arg7[%c0_19, %c0_20] : memref<64x64xbf16, #tpu.memory_space<vmem>>, vector<64x64xbf16>
    %cst_21 = arith.constant dense<0.000000e+00> : vector<8x64xf32>
    %62 = tpu.matmul %60, %61, %cst_21 {dimension_numbers = #tpu.dot_dimension_numbers<[1], [0], [0], [1], [0, 0, 1, 1], [], []>} : vector<8x64xbf16>, vector<64x64xbf16>, vector<8x64xf32> -> vector<8x64xf32>
    %c0_22 = arith.constant 0 : index
    %c0_23 = arith.constant 0 : index
    %63 = vector.load %arg8[%c0_22, %c0_23] : memref<1x64xf32, #tpu.memory_space<vmem>>, vector<1x64xf32>
    %64 = vector.broadcast %63 : vector<1x64xf32> to vector<8x64xf32>
    %65 = arith.addf %62, %64 : vector<8x64xf32>
    %cst_24 = arith.constant 0.000000e+00 : f32
    %66 = vector.broadcast %cst_24 : f32 to vector<8x64xf32>
    %67 = arith.maximumf %65, %66 : vector<8x64xf32>
    %68 = arith.truncf %67 : vector<8x64xf32> to vector<8x64xbf16>
    %c0_25 = arith.constant 0 : index
    %c0_26 = arith.constant 0 : index
    %69 = vector.load %arg9[%c0_25, %c0_26] : memref<64x64xbf16, #tpu.memory_space<vmem>>, vector<64x64xbf16>
    %cst_27 = arith.constant dense<0.000000e+00> : vector<8x64xf32>
    %70 = tpu.matmul %68, %69, %cst_27 {dimension_numbers = #tpu.dot_dimension_numbers<[1], [0], [0], [1], [0, 0, 1, 1], [], []>} : vector<8x64xbf16>, vector<64x64xbf16>, vector<8x64xf32> -> vector<8x64xf32>
    %c0_28 = arith.constant 0 : index
    %c0_29 = arith.constant 0 : index
    %71 = vector.load %arg10[%c0_28, %c0_29] : memref<1x64xf32, #tpu.memory_space<vmem>>, vector<1x64xf32>
    %72 = vector.broadcast %71 : vector<1x64xf32> to vector<8x64xf32>
    %73 = arith.addf %70, %72 : vector<8x64xf32>
    %cst_30 = arith.constant 0.000000e+00 : f32
    %74 = vector.broadcast %cst_30 : f32 to vector<8x64xf32>
    %75 = arith.maximumf %73, %74 : vector<8x64xf32>
    %76 = arith.truncf %75 : vector<8x64xf32> to vector<8x64xbf16>
    %c0_31 = arith.constant 0 : index
    %c0_32 = arith.constant 0 : index
    %77 = vector.load %arg11[%c0_31, %c0_32] : memref<64x1xbf16, #tpu.memory_space<vmem>>, vector<64x1xbf16>
    %cst_33 = arith.constant dense<0.000000e+00> : vector<8x1xf32>
    %78 = tpu.matmul %76, %77, %cst_33 {dimension_numbers = #tpu.dot_dimension_numbers<[1], [0], [0], [1], [0, 0, 1, 1], [], []>} : vector<8x64xbf16>, vector<64x1xbf16>, vector<8x1xf32> -> vector<8x1xf32>
    %c0_34 = arith.constant 0 : index
    %c0_35 = arith.constant 0 : index
    %79 = vector.load %arg12[%c0_34, %c0_35] : memref<1x1xf32, #tpu.memory_space<vmem>>, vector<1x1xf32>
    %80 = vector.broadcast %79 : vector<1x1xf32> to vector<8x1xf32>
    %81 = arith.addf %78, %80 : vector<8x1xf32>
    %c0_36 = arith.constant 0 : index
    %c0_37 = arith.constant 0 : index
    %82 = vector.load %arg13[%c0_36, %c0_37] : memref<8x1xf32, #tpu.memory_space<vmem>>, vector<8x1xf32>
    tpu.vector_store %arg13[%c0_36, %c0_37], %81 {strides = array<i32>} : memref<8x1xf32, #tpu.memory_space<vmem>>, vector<8x1xf32>,
    return
  }
  func.func @transform_0(%arg0: i32) -> (i32, i32) {
    %c0_i32 = arith.constant 0 : i32
    %c0_i32_0 = arith.constant 0 : i32
    return %arg0, %c0_i32 : i32, i32
  }
  func.func @transform_1(%arg0: i32) -> (i32, i32) {
    %c0_i32 = arith.constant 0 : i32
    %c0_i32_0 = arith.constant 0 : i32
    return %arg0, %c0_i32 : i32, i32
  }
  func.func @transform_2(%arg0: i32) -> (i32, i32) {
    %c0_i32 = arith.constant 0 : i32
    %c0_i32_0 = arith.constant 0 : i32
    %c0_i32_1 = arith.constant 0 : i32
    return %c0_i32, %c0_i32_0 : i32, i32
  }
  func.func @transform_3(%arg0: i32) -> (i32, i32) {
    %c0_i32 = arith.constant 0 : i32
    %c0_i32_0 = arith.constant 0 : i32
    %c0_i32_1 = arith.constant 0 : i32
    return %c0_i32, %c0_i32_0 : i32, i32
  }
  func.func @transform_4(%arg0: i32) -> (i32, i32) {
    %c0_i32 = arith.constant 0 : i32
    %c0_i32_0 = arith.constant 0 : i32
    %c0_i32_1 = arith.constant 0 : i32
    return %c0_i32, %c0_i32_0 : i32, i32
  }
  func.func @transform_5(%arg0: i32) -> (i32, i32) {
    %c0_i32 = arith.constant 0 : i32
    %c0_i32_0 = arith.constant 0 : i32
    %c0_i32_1 = arith.constant 0 : i32
    return %c0_i32, %c0_i32_0 : i32, i32
  }
  func.func @transform_6(%arg0: i32) -> (i32, i32) {
    %c0_i32 = arith.constant 0 : i32
    %c0_i32_0 = arith.constant 0 : i32
    %c0_i32_1 = arith.constant 0 : i32
    return %c0_i32, %c0_i32_0 : i32, i32
  }
  func.func @transform_7(%arg0: i32) -> (i32, i32) {
    %c0_i32 = arith.constant 0 : i32
    %c0_i32_0 = arith.constant 0 : i32
    %c0_i32_1 = arith.constant 0 : i32
    return %c0_i32, %c0_i32_0 : i32, i32
  }
  func.func @transform_8(%arg0: i32) -> (i32, i32) {
    %c0_i32 = arith.constant 0 : i32
    %c0_i32_0 = arith.constant 0 : i32
    %c0_i32_1 = arith.constant 0 : i32
    return %c0_i32, %c0_i32_0 : i32, i32
  }
  func.func @transform_9(%arg0: i32) -> (i32, i32) {
    %c0_i32 = arith.constant 0 : i32
    %c0_i32_0 = arith.constant 0 : i32
    %c0_i32_1 = arith.constant 0 : i32
    return %c0_i32, %c0_i32_0 : i32, i32
  }
  func.func @transform_10(%arg0: i32) -> (i32, i32) {
    %c0_i32 = arith.constant 0 : i32
    %c0_i32_0 = arith.constant 0 : i32
    %c0_i32_1 = arith.constant 0 : i32
    return %c0_i32, %c0_i32_0 : i32, i32
  }
  func.func @transform_11(%arg0: i32) -> (i32, i32) {
    %c0_i32 = arith.constant 0 : i32
    %c0_i32_0 = arith.constant 0 : i32
    %c0_i32_1 = arith.constant 0 : i32
    return %c0_i32, %c0_i32_0 : i32, i32
  }
  func.func @transform_12(%arg0: i32) -> (i32, i32) {
    %c0_i32 = arith.constant 0 : i32
    %c0_i32_0 = arith.constant 0 : i32
    return %arg0, %c0_i32 : i32, i32
  }
}

</mosaic_0001>

<llo_original>
// kernel: tpu_custom_call.1
$region0: #{tpu_custom_call.1}
  #allocation0 [shape = 'u32[]', space=smem, size = 0x4, offset = 0x4, fixed_abs, tag = 'smem constant byte address 0x4 - core index']
  #allocation1 [shape = 'u32[72,128]{1,0:T(1,128)}', space=vmem, size = 0x9000, scoped, tag = 'internal scratch']
  #allocation2 [shape = 'f32[1,1]{1,0:T(1,128)S(1)}', space=vmem, size = 0x200, scoped, tag = 'scoped memory for tpu_custom_call.1']
  %s0 = inlined_call_operand.vmem [shape: f32[8,30], index: 0, kind: input, shape index: {}]
  %s1 = inlined_call_operand.vmem [shape: f32[8,1], index: 1, kind: input, shape index: {}]
  %s2 = inlined_call_operand.hbm [shape: bf16[30,64], index: 2, kind: input, shape index: {}]
  %s3 = inlined_call_operand.vmem [shape: f32[1,64], index: 3, kind: input, shape index: {}]
  %s4 = inlined_call_operand.vmem [shape: bf16[64,64], index: 4, kind: input, shape index: {}]
  %s5 = inlined_call_operand.hbm [shape: f32[6,64], index: 5, kind: input, shape index: {}]
  %s6 = inlined_call_operand.hbm [shape: bf16[64,64], index: 6, kind: input, shape index: {}]
  %s7 = inlined_call_operand.vmem [shape: f32[1,64], index: 7, kind: input, shape index: {}]
  %s8 = inlined_call_operand.hbm [shape: bf16[64,64], index: 8, kind: input, shape index: {}]
  %s9 = inlined_call_operand.vmem [shape: f32[1,64], index: 9, kind: input, shape index: {}]
  %s10 = inlined_call_operand.vmem [shape: bf16[64,1], index: 10, kind: input, shape index: {}]
  %s11 = inlined_call_operand.<no memory space> [shape: f32[1,1], index: 11, kind: input, shape index: {}]
  %s12 = inlined_call_operand.vmem [shape: f32[8,1], index: 12, kind: output, shape index: {}]
  %s13 = sld [smem:[#allocation0]]
  $region74: #{tpu_custom_call.1} parent=0
    _
  %s15 = ssub.s32 1, %s13
  %s16 = scalar_select 0, %s15, %s13
  %v17 = vstv %s11
  %18 = vst [vmem:[#allocation2] sm:$0x1] %v17
  $region1: #{tpu_custom_call.1} parent=0
    #allocation3 [shape = 'u8[8192]{0}', space=vmem, size = 0x2000, scoped, tag = 'input window, operand 2, single buffered']
    #allocation4 [shape = 's32[1]{0}', space=sflag, size = 0x4, scoped, tag = 'scoped memory for tpu_custom_call.1']
    #allocation5 [shape = 'u8[4096]{0}', space=vmem, size = 0x1000, scoped, tag = 'input window, operand 5, single buffered']
    #allocation6 [shape = 's32[1]{0}', space=sflag, size = 0x4, scoped, tag = 'scoped memory for tpu_custom_call.1']
    #allocation7 [shape = 'u8[16384]{0}', space=vmem, size = 0x4000, scoped, tag = 'input window, operand 6, single buffered']
    #allocation8 [shape = 'u8[16384]{0}', space=vmem, size = 0x4000, scoped, tag = 'input window, operand 8, single buffered']
    #allocation9 [shape = 's32[1]{0}', space=sflag, size = 0x4, scoped, tag = 'scoped memory for tpu_custom_call.1']
    %19 = vsyncpa [#allocation4], 0
    %20 = vsyncpa [#allocation6], 0
    %21 = vsyncpa [#allocation9], 0
    // Predicated region
    $region2: #{tpu_custom_call.1} parent=1 // pred_check
      _
    $region3: #{tpu_custom_call.1} parent=1 // pred_check_branch
      %23 = sbr.rel (0) target = $region5
    $region4: #{tpu_custom_call.1} parent=1 // pred_region
      _
    $region5: #{tpu_custom_call.1} parent=1 // pred_fallthru
      _
    // Predicated region
    $region6: #{tpu_custom_call.1} parent=1 // pred_check
      _
    $region7: #{tpu_custom_call.1} parent=1 // pred_check_branch
      %25 = sbr.rel (0) target = $region9
    $region8: #{tpu_custom_call.1} parent=1 // pred_region
      _
    $region9: #{tpu_custom_call.1} parent=1 // pred_fallthru
      _
    // Predicated region
    $region10: #{tpu_custom_call.1} parent=1 // pred_check
      _
    $region11: #{tpu_custom_call.1} parent=1 // pred_check_branch
      %27 = sbr.rel (0) target = $region13
    $region12: #{tpu_custom_call.1} parent=1 // pred_region
      %29 = vsyncadd [#allocation4], 0
      %s30 = sshll.u32 %s2, 4
      %s31 = int_to_ptr.hbm [resolvable:$true] %s30
      %s32 = sshll.u32 [#allocation3], 4
      %s33 = int_to_ptr.vmem [resolvable:$true] %s32
      %38 = dma.hbm_to_vmem [thread:$0]  %s31, 256, %s33, [#allocation4], 64, 64, 4
    $region13: #{tpu_custom_call.1} parent=1 // pred_fallthru
      _
    // Predicated region
    $region14: #{tpu_custom_call.1} parent=1 // pred_check
      _
    $region15: #{tpu_custom_call.1} parent=1 // pred_check_branch
      %40 = sbr.rel (0) target = $region17
    $region16: #{tpu_custom_call.1} parent=1 // pred_region
      _
    $region17: #{tpu_custom_call.1} parent=1 // pred_fallthru
      _
    // Predicated region
    $region18: #{tpu_custom_call.1} parent=1 // pred_check
      _
    $region19: #{tpu_custom_call.1} parent=1 // pred_check_branch
      %42 = sbr.rel (0) target = $region21
    $region20: #{tpu_custom_call.1} parent=1 // pred_region
      _
    $region21: #{tpu_custom_call.1} parent=1 // pred_fallthru
      _
    // Predicated region
    $region22: #{tpu_custom_call.1} parent=1 // pred_check
      _
    $region23: #{tpu_custom_call.1} parent=1 // pred_check_branch
      %44 = sbr.rel (0) target = $region25
    $region24: #{tpu_custom_call.1} parent=1 // pred_region
      %46 = vsyncadd [#allocation6], 0
      %s48 = sshll.u32 %s5, 4
      %s49 = int_to_ptr.hbm [resolvable:$true] %s48
      %s50 = sshll.u32 [#allocation5], 4
      %s51 = int_to_ptr.vmem [resolvable:$true] %s50
      %53 = dma.hbm_to_vmem [thread:$0]  %s49, 128, %s51, [#allocation6]
    $region25: #{tpu_custom_call.1} parent=1 // pred_fallthru
      _
    // Predicated region
    $region26: #{tpu_custom_call.1} parent=1 // pred_check
      _
    $region27: #{tpu_custom_call.1} parent=1 // pred_check_branch
      %55 = sbr.rel (0) target = $region29
    $region28: #{tpu_custom_call.1} parent=1 // pred_region
      %57 = vsyncadd [#allocation6], 0
      %s58 = sshll.u32 %s6, 4
      %s59 = int_to_ptr.hbm [resolvable:$true] %s58
      %s60 = sshll.u32 [#allocation7], 4
      %s61 = int_to_ptr.vmem [resolvable:$true] %s60
      %66 = dma.hbm_to_vmem [thread:$0]  %s59, 512, %s61, [#allocation6], 64, 64, 4
    $region29: #{tpu_custom_call.1} parent=1 // pred_fallthru
      _
    // Predicated region
    $region30: #{tpu_custom_call.1} parent=1 // pred_check
      _
    $region31: #{tpu_custom_call.1} parent=1 // pred_check_branch
      %68 = sbr.rel (0) target = $region33
    $region32: #{tpu_custom_call.1} parent=1 // pred_region
      _
    $region33: #{tpu_custom_call.1} parent=1 // pred_fallthru
      _
    // Predicated region
    $region34: #{tpu_custom_call.1} parent=1 // pred_check
      _
    $region35: #{tpu_custom_call.1} parent=1 // pred_check_branch
      %70 = sbr.rel (0) target = $region37
    $region36: #{tpu_custom_call.1} parent=1 // pred_region
      %72 = vsyncadd [#allocation9], 0
      %s73 = sshll.u32 %s8, 4
      %s74 = int_to_ptr.hbm [resolvable:$true] %s73
      %s75 = sshll.u32 [#allocation8], 4
      %s76 = int_to_ptr.vmem [resolvable:$true] %s75
      %81 = dma.hbm_to_vmem [thread:$0]  %s74, 512, %s76, [#allocation9], 64, 64, 4
    $region37: #{tpu_custom_call.1} parent=1 // pred_fallthru
      _
    // Predicated region
    $region38: #{tpu_custom_call.1} parent=1 // pred_check
      _
    $region39: #{tpu_custom_call.1} parent=1 // pred_check_branch
      %83 = sbr.rel (0) target = $region41
    $region40: #{tpu_custom_call.1} parent=1 // pred_region
      _
    $region41: #{tpu_custom_call.1} parent=1 // pred_fallthru
      _
    // Predicated region
    $region42: #{tpu_custom_call.1} parent=1 // pred_check
      _
    $region43: #{tpu_custom_call.1} parent=1 // pred_check_branch
      %85 = sbr.rel (0) target = $region45
    $region44: #{tpu_custom_call.1} parent=1 // pred_region
      _
    $region45: #{tpu_custom_call.1} parent=1 // pred_fallthru
      _
    // Predicated region
    $region46: #{tpu_custom_call.1} parent=1 // pred_check
      _
    $region47: #{tpu_custom_call.1} parent=1 // pred_check_branch
      %87 = sbr.rel (0) target = $region49
    $region48: #{tpu_custom_call.1} parent=1 // pred_region
      _
    $region49: #{tpu_custom_call.1} parent=1 // pred_fallthru
      _
    // Predicated region
    $region50: #{tpu_custom_call.1} parent=1 // pred_check
      _
    $region51: #{tpu_custom_call.1} parent=1 // pred_check_branch
      %89 = sbr.rel (0) target = $region53
    $region52: #{tpu_custom_call.1} parent=1 // pred_region
      %91 = dma.done [#allocation4], 256
    $region53: #{tpu_custom_call.1} parent=1 // pred_fallthru
      _
    // Predicated region
    $region54: #{tpu_custom_call.1} parent=1 // pred_check
      _
    $region55: #{tpu_custom_call.1} parent=1 // pred_check_branch
      %93 = sbr.rel (0) target = $region57
    $region56: #{tpu_custom_call.1} parent=1 // pred_region
      %95 = dma.done [#allocation6], 128
    $region57: #{tpu_custom_call.1} parent=1 // pred_fallthru
      _
    // Predicated region
    $region58: #{tpu_custom_call.1} parent=1 // pred_check
      _
    $region59: #{tpu_custom_call.1} parent=1 // pred_check_branch
      %97 = sbr.rel (0) target = $region61
    $region60: #{tpu_custom_call.1} parent=1 // pred_region
      %99 = dma.done [#allocation6], 512
    $region61: #{tpu_custom_call.1} parent=1 // pred_fallthru
      _
    // Predicated region
    $region62: #{tpu_custom_call.1} parent=1 // pred_check
      _
    $region63: #{tpu_custom_call.1} parent=1 // pred_check_branch
      %101 = sbr.rel (0) target = $region65
    $region64: #{tpu_custom_call.1} parent=1 // pred_region
      %103 = dma.done [#allocation9], 512
    $region65: #{tpu_custom_call.1} parent=1 // pred_fallthru
      _
    %v105 = vld [vmem:[%s0] sm:$0xff]
    %v106 = vld [vmem:[%s1] sm:$0xff]
    %v107 = vpack.c.bf16 %v105, %v105
    %v108 = vld [vmem:[#allocation3] sm:$0xf]
    %v109 = vld [vmem:[#allocation3 + $0x4] sm:$0xf]
    %v110 = vld [vmem:[#allocation3 + $0x8] sm:$0xf]
    %v111 = vld [vmem:[#allocation3 + $0xc] sm:$0x7]
    %v112 = vld [vmem:[%s3] sm:$0x1]
    %v114 = vperm.slane %v112, 0
    %v120 = vunpack.c.l.b16 %v108
    %v121 = vunpack.c.l.b16 %v109
    %v122 = vunpack.c.l.b16 %v110
    %v123 = vunpack.c.l.b16 %v111
    %v124 = vpack.c.b16 %v121, %v120
    %v125 = vpack.c.b16 %v123, %v122
    %vm127 = vcmask 244736
    %v129 = vsel %vm127, %v107, 0
    %vm131 = vcmask 1046528
    %v133 = vsel %vm131, %v125, 0
    %135 = vmatpush.bf16.msra.mxu0 0
    %136 = vmatpush.bf16.msra.mxu0 0
    %137 = vmatpush.bf16.msra.mxu0 0
    %138 = vmatpush.bf16.msra.mxu0 0
    %139 = vmatpush.bf16.msra.mxu0 0
    %140 = vmatpush.bf16.msra.mxu0 0
    %141 = vmatpush.bf16.msra.mxu0 %v133
    %142 = vmatpush.bf16.msra.mxu0 %v124
    %143 = vmatmul.bf16.gmra.mxu0 %v129
    %v144 = vpop.f32.mrf.mxu0
    %v145 = vadd.f32 %v114, %v144
    %v146 = vpop.f32.mrf.mxu0
    %147 = vdwg.mxu0
    %v148 = vmax.f32 %v145, 0.0
    %v149 = vld [vmem:[#allocation5] sm:$0x3f]
    %vm150 = vcmp.eq.f32.partialorder %v106, 0.0
    %v151 = vsel %vm150, 1, 0
    %152 = vset.pattern.permute.xlu0 0
    %153 = vperm.xlu0 %152, %v151
    %v154 = vpop.permute.xlu0 %153
    %vm155 = vcmp.eq.s32.totalorder %v154, 1
    %v156 = vperm.slane %v149, 0
    %v157 = vperm.slane %v149, 5
    %v158 = vsel %vm155, %v156, %v157
    %vm159 = vcmp.eq.f32.partialorder %v106, 1.0
    %v160 = vsel %vm159, 1, 0
    %161 = vset.pattern.permute.xlu0 0
    %162 = vperm.xlu0 %161, %v160
    %v163 = vpop.permute.xlu0 %162
    %vm164 = vcmp.eq.s32.totalorder %v163, 1
    %v165 = vperm.slane %v149, 1
    %v166 = vsel %vm164, %v165, %v158
    %vm167 = vcmp.eq.f32.partialorder %v106, 2.0
    %v168 = vsel %vm167, 1, 0
    %169 = vset.pattern.permute.xlu0 0
    %170 = vperm.xlu0 %169, %v168
    %v171 = vpop.permute.xlu0 %170
    %vm172 = vcmp.eq.s32.totalorder %v171, 1
    %v173 = vperm.slane %v149, 2
    %v174 = vsel %vm172, %v173, %v166
    %vm175 = vcmp.eq.f32.partialorder %v106, 3.0
    %v176 = vsel %vm175, 1, 0
    %177 = vset.pattern.permute.xlu0 0
    %178 = vperm.xlu0 %177, %v176
    %v179 = vpop.permute.xlu0 %178
    %vm180 = vcmp.eq.s32.totalorder %v179, 1
    %v181 = vperm.slane %v149, 3
    %v182 = vsel %vm180, %v181, %v174
    %vm183 = vcmp.eq.f32.partialorder %v106, 4.0
    %v184 = vsel %vm183, 1, 0
    %185 = vset.pattern.permute.xlu0 0
    %186 = vperm.xlu0 %185, %v184
    %v187 = vpop.permute.xlu0 %186
    %vm188 = vcmp.eq.s32.totalorder %v187, 1
    %v189 = vperm.slane %v149, 4
    %v190 = vsel %vm188, %v189, %v182
    %v191 = vpack.c.bf16 %v148, %v148
    %v192 = vld [vmem:[%s4] sm:$0xf]
    %v193 = vld [vmem:[%s4 + $0x4] sm:$0xf]
    %v194 = vld [vmem:[%s4 + $0x8] sm:$0xf]
    %v195 = vld [vmem:[%s4 + $0xc] sm:$0xf]
    %v196 = vld [vmem:[%s4 + $0x10] sm:$0xf]
    %v197 = vld [vmem:[%s4 + $0x14] sm:$0xf]
    %v198 = vld [vmem:[%s4 + $0x18] sm:$0xf]
    %v199 = vld [vmem:[%s4 + $0x1c] sm:$0xf]
    %v208 = vunpack.c.l.b16 %v192
    %v209 = vunpack.c.l.b16 %v193
    %v210 = vunpack.c.l.b16 %v194
    %v211 = vunpack.c.l.b16 %v195
    %v212 = vunpack.c.l.b16 %v196
    %v213 = vunpack.c.l.b16 %v197
    %v214 = vunpack.c.l.b16 %v198
    %v215 = vunpack.c.l.b16 %v199
    %v216 = vpack.c.b16 %v209, %v208
    %v217 = vpack.c.b16 %v211, %v210
    %v218 = vpack.c.b16 %v213, %v212
    %v219 = vpack.c.b16 %v215, %v214
    %vm224 = vcmask 523264
    %v226 = vsel %vm224, %v191, 0
    %228 = vmatpush.bf16.msra.mxu0 0
    %229 = vmatpush.bf16.msra.mxu0 0
    %230 = vmatpush.bf16.msra.mxu0 0
    %231 = vmatpush.bf16.msra.mxu0 0
    %232 = vmatpush.bf16.msra.mxu0 %v219
    %233 = vmatpush.bf16.msra.mxu0 %v218
    %234 = vmatpush.bf16.msra.mxu0 %v217
    %235 = vmatpush.bf16.msra.mxu0 %v216
    %236 = vmatmul.bf16.gmra.mxu0 %v226
    %v237 = vpop.f32.mrf.mxu0
    %v238 = vadd.f32 %v190, %v237
    %v239 = vpop.f32.mrf.mxu0
    %240 = vdwg.mxu0
    %v241 = vmax.f32 %v238, 0.0
    %v242 = vpack.c.bf16 %v241, %v241
    %v243 = vld [vmem:[#allocation7] sm:$0xf]
    %v244 = vld [vmem:[#allocation7 + $0x4] sm:$0xf]
    %v245 = vld [vmem:[#allocation7 + $0x8] sm:$0xf]
    %v246 = vld [vmem:[#allocation7 + $0xc] sm:$0xf]
    %v247 = vld [vmem:[#allocation7 + $0x10] sm:$0xf]
    %v248 = vld [vmem:[#allocation7 + $0x14] sm:$0xf]
    %v249 = vld [vmem:[#allocation7 + $0x18] sm:$0xf]
    %v250 = vld [vmem:[#allocation7 + $0x1c] sm:$0xf]
    %v251 = vld [vmem:[%s7] sm:$0x1]
    %v253 = vperm.slane %v251, 0
    %v263 = vunpack.c.l.b16 %v243
    %v264 = vunpack.c.l.b16 %v244
    %v265 = vunpack.c.l.b16 %v245
    %v266 = vunpack.c.l.b16 %v246
    %v267 = vunpack.c.l.b16 %v247
    %v268 = vunpack.c.l.b16 %v248
    %v269 = vunpack.c.l.b16 %v249
    %v270 = vunpack.c.l.b16 %v250
    %v271 = vpack.c.b16 %v264, %v263
    %v272 = vpack.c.b16 %v266, %v265
    %v273 = vpack.c.b16 %v268, %v267
    %v274 = vpack.c.b16 %v270, %v269
    %v280 = vsel %vm224, %v242, 0
    %282 = vmatpush.bf16.msra.mxu0 0
    %283 = vmatpush.bf16.msra.mxu0 0
    %284 = vmatpush.bf16.msra.mxu0 0
    %285 = vmatpush.bf16.msra.mxu0 0
    %286 = vmatpush.bf16.msra.mxu0 %v274
    %287 = vmatpush.bf16.msra.mxu0 %v273
    %288 = vmatpush.bf16.msra.mxu0 %v272
    %289 = vmatpush.bf16.msra.mxu0 %v271
    %290 = vmatmul.bf16.gmra.mxu0 %v280
    %v291 = vpop.f32.mrf.mxu0
    %v292 = vadd.f32 %v253, %v291
    %v293 = vpop.f32.mrf.mxu0
    %294 = vdwg.mxu0
    %v295 = vmax.f32 %v292, 0.0
    %v296 = vpack.c.bf16 %v295, %v295
    %v297 = vld [vmem:[#allocation8] sm:$0xf]
    %v298 = vld [vmem:[#allocation8 + $0x4] sm:$0xf]
    %v299 = vld [vmem:[#allocation8 + $0x8] sm:$0xf]
    %v300 = vld [vmem:[#allocation8 + $0xc] sm:$0xf]
    %v301 = vld [vmem:[#allocation8 + $0x10] sm:$0xf]
    %v302 = vld [vmem:[#allocation8 + $0x14] sm:$0xf]
    %v303 = vld [vmem:[#allocation8 + $0x18] sm:$0xf]
    %v304 = vld [vmem:[#allocation8 + $0x1c] sm:$0xf]
    %v305 = vld [vmem:[%s9] sm:$0x1]
    %v307 = vperm.slane %v305, 0
    %v317 = vunpack.c.l.b16 %v297
    %v318 = vunpack.c.l.b16 %v298
    %v319 = vunpack.c.l.b16 %v299
    %v320 = vunpack.c.l.b16 %v300
    %v321 = vunpack.c.l.b16 %v301
    %v322 = vunpack.c.l.b16 %v302
    %v323 = vunpack.c.l.b16 %v303
    %v324 = vunpack.c.l.b16 %v304
    %v325 = vpack.c.b16 %v318, %v317
    %v326 = vpack.c.b16 %v320, %v319
    %v327 = vpack.c.b16 %v322, %v321
    %v328 = vpack.c.b16 %v324, %v323
    %v334 = vsel %vm224, %v296, 0
    %336 = vmatpush.bf16.msra.mxu0 0
    %337 = vmatpush.bf16.msra.mxu0 0
    %338 = vmatpush.bf16.msra.mxu0 0
    %339 = vmatpush.bf16.msra.mxu0 0
    %340 = vmatpush.bf16.msra.mxu0 %v328
    %341 = vmatpush.bf16.msra.mxu0 %v327
    %342 = vmatpush.bf16.msra.mxu0 %v326
    %343 = vmatpush.bf16.msra.mxu0 %v325
    %344 = vmatmul.bf16.gmra.mxu0 %v334
    %v345 = vpop.f32.mrf.mxu0
    %v346 = vadd.f32 %v307, %v345
    %v347 = vpop.f32.mrf.mxu0
    %348 = vdwg.mxu0
    %v349 = vmax.f32 %v346, 0.0
    %v350 = vpack.c.bf16 %v349, %v349
    %v351 = vld [vmem:[%s10] sm:$0xf]
    %v352 = vld [vmem:[%s10 + $0x4] sm:$0xf]
    %v353 = vld [vmem:[%s10 + $0x8] sm:$0xf]
    %v354 = vld [vmem:[%s10 + $0xc] sm:$0xf]
    %v355 = vld [vmem:[%s10 + $0x10] sm:$0xf]
    %v356 = vld [vmem:[%s10 + $0x14] sm:$0xf]
    %v357 = vld [vmem:[%s10 + $0x18] sm:$0xf]
    %v358 = vld [vmem:[%s10 + $0x1c] sm:$0xf]
    %v359 = vld [vmem:[#allocation2] sm:$0x1]
    %v361 = vperm.slane %v359, 0
    %v371 = vunpack.c.l.b16 %v351
    %v372 = vunpack.c.l.b16 %v352
    %v373 = vunpack.c.l.b16 %v353
    %v374 = vunpack.c.l.b16 %v354
    %v375 = vunpack.c.l.b16 %v355
    %v376 = vunpack.c.l.b16 %v356
    %v377 = vunpack.c.l.b16 %v357
    %v378 = vunpack.c.l.b16 %v358
    %v379 = vpack.c.b16 %v372, %v371
    %v380 = vpack.c.b16 %v374, %v373
    %v381 = vpack.c.b16 %v376, %v375
    %v382 = vpack.c.b16 %v378, %v377
    %v388 = vsel %vm224, %v350, 0
    %390 = vmatpush.bf16.msra.mxu0 0
    %391 = vmatpush.bf16.msra.mxu0 0
    %392 = vmatpush.bf16.msra.mxu0 0
    %393 = vmatpush.bf16.msra.mxu0 0
    %394 = vmatpush.bf16.msra.mxu0 %v382
    %395 = vmatpush.bf16.msra.mxu0 %v381
    %396 = vmatpush.bf16.msra.mxu0 %v380
    %397 = vmatpush.bf16.msra.mxu0 %v379
    %398 = vmatmul.bf16.gmra.mxu0 %v388
    %v399 = vpop.f32.mrf.mxu0
    %v400 = vadd.f32 %v361, %v399
    %v401 = vpop.f32.mrf.mxu0
    %402 = vdwg.mxu0
    %vm403 = vcmask 7168
    %404 = vst.msk [vmem:[%s12] sm:$0xff] %vm403, %v400
    // Predicated region
    $region66: #{tpu_custom_call.1} parent=1 // pred_check
      _
    $region67: #{tpu_custom_call.1} parent=1 // pred_check_branch
      %406 = sbr.rel (0) target = $region69
    $region68: #{tpu_custom_call.1} parent=1 // pred_region
      _
    $region69: #{tpu_custom_call.1} parent=1 // pred_fallthru
      _
    // Predicated region
    $region70: #{tpu_custom_call.1} parent=1 // pred_check
      _
    $region71: #{tpu_custom_call.1} parent=1 // pred_check_branch
      %408 = sbr.rel (0) target = $region73
    $region72: #{tpu_custom_call.1} parent=1 // pred_region
      _
    $region73: #{tpu_custom_call.1} parent=1 // pred_fallthru
      _
    %409 = vsyncpa [#allocation4], 1
    %410 = vsyncpa [#allocation6], 1
    %411 = vsyncpa [#allocation9], 1

</llo_original>
